<compile_context>
chip_gen: v7x
topology: tpu7x:2x2x1
jax: 0.10.0
libtpu: 0.0.40
codegen_flags: <defaults>
</compile_context>

<pallas_src>
import functools

import jax
import jax.numpy as jnp
from jax.experimental import pallas as pl
from jax.experimental.pallas import tpu as pltpu


def _round_up(a: int, b: int) -> int:
    return (a + b - 1) // b * b


def _quantinizer_kernel(x_ref, e_ref, o_ref, *, size: int):
    # x_ref: (bm, C)        float32 tile of flattened inputs
    # e_ref: (C, C*size)    float32 constant selector, e[i, i*size + c] = 1
    # o_ref: (bm, C*size)   one-hot output tile (lane-dense)
    x = x_ref[...]
    # Match PyTorch order exactly: (x * size) * 0.999 in f32, then trunc toward zero.
    q = ((x * size) * 0.999).astype(jnp.int32)            # (bm, C)
    qf = q.astype(jnp.float32)

    # Replicate each element's quantized value into its `size` consecutive output
    # lanes via a single MXU matmul (exact: one nonzero 0/1 term per output lane).
    q_rep = jnp.dot(qf, e_ref[...], preferred_element_type=jnp.float32)  # (bm, C*size)

    lane = jax.lax.broadcasted_iota(jnp.int32, o_ref.shape, 1)
    cls = (lane % size).astype(jnp.float32)                # class index within group
    # |diff| < 0.5 is an exact integer-equality test (robust to any matmul rounding).
    o_ref[...] = (jnp.abs(q_rep - cls) < 0.5).astype(o_ref.dtype)


def quantinizer(x: jax.Array, size: int, *, block_m: int = 512,
                out_dtype=jnp.float32) -> jax.Array:
    """Pallas implementation of Quantinizer.forward.

    out_dtype defaults to float32 for strict PyTorch parity; pass jnp.bfloat16 (exact
    for 0/1 values) to halve the HBM write traffic if the consumer allows it.
    """
    orig_shape = x.shape
    n = x.size                       # static python int
    C = 128                          # lane-dense input width
    L = C * size                     # lane-dense fused output width (multiple of 128)

    rows = -(-n // C)                # cdiv(n, C)
    # Cap the output tile at ~4 MiB so double-buffered tiles fit comfortably on
    # v5e/v6e/v7x (v7x has only 64 MiB VMEM per TensorCore).
    bm_cap = max(8, ((4 * 1024 * 1024) // (L * 4)) // 8 * 8)
    # Keep at least 2 grid steps when possible so v7x's 2 TensorCores both get work.
    bm_half = max(8, _round_up(-(-rows // 2), 8))
    bm = max(8, min(block_m, bm_cap, bm_half))

    rows_p = _round_up(rows, bm)
    pad = rows_p * C - n

    x_flat = x.reshape(-1).astype(jnp.float32)
    if pad:
        x_flat = jnp.pad(x_flat, (0, pad))   # padded zeros quantize to class 0; sliced off below
    x2d = x_flat.reshape(rows_p, C)

    # Constant selector matrix: E[i, i*size + c] = 1.  Block index is constant across the
    # grid, so it is DMA'd once and stays resident in VMEM.
    lane_ids = jnp.arange(L, dtype=jnp.int32)
    e = (lane_ids[None, :] // size == jnp.arange(C, dtype=jnp.int32)[:, None]
         ).astype(jnp.float32)               # (C, L)

    grid = (rows_p // bm,)
    out2d = pl.pallas_call(
        functools.partial(_quantinizer_kernel, size=size),
        out_shape=jax.ShapeDtypeStruct((rows_p, L), out_dtype),
        grid_spec=pltpu.PrefetchScalarGridSpec(
            num_scalar_prefetch=0,
            grid=grid,
            in_specs=[
                pl.BlockSpec((bm, C), lambda i: (i, 0)),
                pl.BlockSpec((C, L), lambda i: (0, 0)),
            ],
            out_specs=pl.BlockSpec((bm, L), lambda i: (i, 0)),
        ),
        compiler_params=pltpu.CompilerParams(
            dimension_semantics=("parallel",),
            vmem_limit_bytes=48 * 1024 * 1024,
        ),
    )(x2d, e)

    out_flat = out2d.reshape(-1)
    if pad:
        out_flat = out_flat[: n * size]
    return out_flat.reshape(*orig_shape, size)


def _reference(x: jax.Array, size: int) -> jax.Array:
    q = ((x * size) * 0.999).astype(jnp.int32)   # same op order as PyTorch
    return jax.nn.one_hot(q, size, dtype=jnp.float32)


if __name__ == "__main__":
    key = jax.random.PRNGKey(0)
    size = 16
    # Input in [0, 1) like a normalized signal (Quantinizer expects values whose
    # quantized index lies in [0, size)).
    x = jax.random.uniform(key, (2, 4, 16, 16), dtype=jnp.float32)

    y = quantinizer(x, size)
    y = jax.block_until_ready(y)

    y_ref = _reference(x, size)
    assert y.shape == (2, 4, 16, 16, size), y.shape
    assert jnp.array_equal(y, y_ref.astype(y.dtype)), "mismatch vs reference"

    print("KERNEL_OK")
</pallas_src>

<mosaic_0001>
module attributes {stable_mosaic.version = 11 : i64} {
  func.func @_quantinizer_kernel(%arg0: i32, %arg1: memref<8x128xf32, #tpu.memory_space<vmem>>, %arg2: memref<128x2048xf32, #tpu.memory_space<vmem>>, %arg3: memref<8x2048xf32, #tpu.memory_space<vmem>>) attributes {dimension_semantics = [#tpu.dimension_semantics<parallel>], iteration_bounds = array<i64: 2>, scalar_prefetch = 0 : i64, scratch_operands = 0 : i64, tpu.core_type = #tpu.core_type<tc>, window_params = [{transform_indices = @transform_0, window_bounds = array<i64: 8, 128>}, {pipeline_mode = #tpu.pipeline_mode<synchronous>, transform_indices = @transform_1, window_bounds = array<i64: 128, 2048>}, {transform_indices = @transform_2, window_bounds = array<i64: 8, 2048>}]} {
    %c0 = arith.constant 0 : index
    %c0_0 = arith.constant 0 : index
    %0 = vector.load %arg1[%c0, %c0_0] : memref<8x128xf32, #tpu.memory_space<vmem>>, vector<8x128xf32>
    %cst = arith.constant 1.600000e+01 : f32
    %1 = vector.broadcast %cst : f32 to vector<8x128xf32>
    %2 = arith.mulf %0, %1 : vector<8x128xf32>
    %cst_1 = arith.constant 9.990000e-01 : f32
    %3 = vector.broadcast %cst_1 : f32 to vector<8x128xf32>
    %4 = arith.mulf %2, %3 : vector<8x128xf32>
    %5 = arith.fptosi %4 : vector<8x128xf32> to vector<8x128xi32>
    %6 = arith.sitofp %5 : vector<8x128xi32> to vector<8x128xf32>
    %c0_2 = arith.constant 0 : index
    %c0_3 = arith.constant 0 : index
    %7 = vector.load %arg2[%c0_2, %c0_3] : memref<128x2048xf32, #tpu.memory_space<vmem>>, vector<128x2048xf32>
    %cst_4 = arith.constant dense<0.000000e+00> : vector<8x2048xf32>
    %8 = tpu.matmul %6, %7, %cst_4 {dimension_numbers = #tpu.dot_dimension_numbers<[1], [0], [0], [1], [0, 0, 1, 1], [], []>} : vector<8x128xf32>, vector<128x2048xf32>, vector<8x2048xf32> -> vector<8x2048xf32>
    %9 = tpu.iota {dimensions = array<i32: 1>} : vector<8x2048xi32>
    %c16_i32 = arith.constant 16 : i32
    %c0_i32 = arith.constant 0 : i32
    %10 = arith.cmpi eq, %c16_i32, %c0_i32 : i32
    %c1_i32 = arith.constant 1 : i32
    %11 = arith.select %10, %c1_i32, %c16_i32 : i32
    %12 = vector.broadcast %11 : i32 to vector<8x2048xi32>
    %13 = arith.remsi %9, %12 : vector<8x2048xi32>
    %c0_i32_5 = arith.constant 0 : i32
    %14 = vector.broadcast %c0_i32_5 : i32 to vector<8x2048xi32>
    %15 = arith.cmpi ne, %13, %14 : vector<8x2048xi32>
    %c0_i32_6 = arith.constant 0 : i32
    %16 = vector.broadcast %c0_i32_6 : i32 to vector<8x2048xi32>
    %17 = arith.cmpi slt, %13, %16 : vector<8x2048xi32>
    %c0_i32_7 = arith.constant 0 : i32
    %18 = arith.cmpi slt, %11, %c0_i32_7 : i32
    %19 = vector.broadcast %18 : i1 to vector<8x2048xi1>
    %20 = vector.broadcast %19 : vector<8x2048xi1> to vector<8x2048xi1>
    %21 = arith.xori %17, %20 : vector<8x2048xi1>
    %22 = arith.andi %21, %15 : vector<8x2048xi1>
    %23 = vector.broadcast %11 : i32 to vector<8x2048xi32>
    %24 = arith.addi %13, %23 : vector<8x2048xi32>
    %25 = arith.select %22, %24, %13 : vector<8x2048xi1>, vector<8x2048xi32>
    %26 = arith.sitofp %25 : vector<8x2048xi32> to vector<8x2048xf32>
    %27 = arith.subf %8, %26 : vector<8x2048xf32>
    %28 = math.absf %27 : vector<8x2048xf32>
    %cst_8 = arith.constant 5.000000e-01 : f32
    %29 = vector.broadcast %cst_8 : f32 to vector<8x2048xf32>
    %30 = arith.cmpf olt, %28, %29 : vector<8x2048xf32>
    %31 = arith.extui %30 : vector<8x2048xi1> to vector<8x2048xi32>
    %32 = arith.sitofp %31 : vector<8x2048xi32> to vector<8x2048xf32>
    %c0_9 = arith.constant 0 : index
    %c0_10 = arith.constant 0 : index
    %33 = vector.load %arg3[%c0_9, %c0_10] : memref<8x2048xf32, #tpu.memory_space<vmem>>, vector<8x2048xf32>
    tpu.vector_store %arg3[%c0_9, %c0_10], %32 {strides = array<i32>} : memref<8x2048xf32, #tpu.memory_space<vmem>>, vector<8x2048xf32>,
    return
  }
  func.func @transform_0(%arg0: i32) -> (i32, i32) {
    %c0_i32 = arith.constant 0 : i32
    %c0_i32_0 = arith.constant 0 : i32
    return %arg0, %c0_i32 : i32, i32
  }
  func.func @transform_1(%arg0: i32) -> (i32, i32) {
    %c0_i32 = arith.constant 0 : i32
    %c0_i32_0 = arith.constant 0 : i32
    %c0_i32_1 = arith.constant 0 : i32
    return %c0_i32, %c0_i32_0 : i32, i32
  }
  func.func @transform_2(%arg0: i32) -> (i32, i32) {
    %c0_i32 = arith.constant 0 : i32
    %c0_i32_0 = arith.constant 0 : i32
    return %arg0, %c0_i32 : i32, i32
  }
}

</mosaic_0001>

<llo_original>
// kernel: tpu_custom_call.1
$region0: #{tpu_custom_call.1}
  #allocation0 [shape = 'u32[]', space=smem, size = 0x4, offset = 0x4, fixed_abs, tag = 'smem constant byte address 0x4 - core index']
  #allocation1 [shape = 'u32[144,128]{1,0:T(1,128)}', space=vmem, size = 0x12000, scoped, tag = 'internal scratch']
  %s0 = inlined_call_operand.hbm [shape: f32[16,128], index: 0, kind: input, shape index: {}]
  %s1 = inlined_call_operand.hbm [shape: f32[128,2048], index: 1, kind: input, shape index: {}]
  %s2 = inlined_call_operand.hbm [shape: f32[16,2048], index: 2, kind: output, shape index: {}]
  %s3 = sld [smem:[#allocation0]]
  $region49: #{tpu_custom_call.1} parent=0
    _
  %s5 = ssub.s32 1, %s3
  %s6 = scalar_select 0, %s5, %s3
  $region1: #{tpu_custom_call.1} parent=0
    #allocation2 [shape = 'u8[8192]{0}', space=vmem, size = 0x2000, scoped, tag = 'input window, operand 0']
    #allocation3 [shape = 's32[2]{0}', space=sflag, size = 0x8, scoped, tag = 'scoped memory for tpu_custom_call.1']
    #allocation4 [shape = 's32[2]{0}', space=sflag, size = 0x8, scoped, tag = 'scoped memory for tpu_custom_call.1']
    #allocation5 [shape = 'u8[1048576]{0}', space=vmem, size = 0x100000, scoped, tag = 'input window, operand 1, single buffered']
    #allocation6 [shape = 's32[1]{0}', space=sflag, size = 0x4, scoped, tag = 'scoped memory for tpu_custom_call.1']
    #allocation7 [shape = 'u8[131072]{0}', space=vmem, size = 0x20000, scoped, tag = 'output window, operand 0']
    %7 = vsyncpa [#allocation3], 0
    %s8 = scalar_lea.sflag [#allocation3], 1
    %9 = vsyncpa %s8, 0
    %10 = vsyncpa [#allocation6], 0
    %11 = vsyncpa [#allocation4], 0
    %s12 = scalar_lea.sflag [#allocation4], 1
    %13 = vsyncpa %s12, 0
    loop: start=0, step=1, limit=4
    $region2: #{tpu_custom_call.1} parent=1 // loop_pre_header
      _
    $region3: #{tpu_custom_call.1} parent=1 // loop_header
      %s15 = sphi 0, %s19
      %p16 = scmp.ge.s32.totalorder %s15, 4
      %s25 = sphi 0, %s27
      %s28 = sphi 0, %s25
      %s29 = sphi 0, %s28
      %s45 = sphi 0, %s29
      %s49 = sphi 0, %s49
      %s51 = sphi 0, %s49
      %s52 = sphi 0, %s51
      %s66 = sphi 0, %s52
      %s72 = sphi 0, %s74
      %s75 = sphi 0, %s72
      %s76 = sphi 0, %s75
      %s92 = sphi 0, %s76
    $region4: #{tpu_custom_call.1} parent=1 // loop_header_branch
      %18 = sbr.rel (%p16) target = $region8
    $region5: #{tpu_custom_call.1} parent=1 // loop_body
      %s20 = ssub.s32 %s15, 1
      %s21 = ssub.s32 %s15, 2
      %s22 = sadd.s32 %s15, 1
      %s23 = ssub.s32 %s15, %s22
      %p24 = scmp.eq.s32.totalorder %s23, 0
      %s26 = sadd.s32 %s25, 1
      %s27 = scalar_select %p24, %s25, %s26
      %p30 = pneg %p24
      %p31 = scmp.eq.s32.totalorder %s15, 1
      %p32 = por %p30, %p31
      %p33 = scmp.ne.s32.totalorder %s25, %s28
      %p34 = scmp.eq.s32.totalorder %s15, 0
      %p35 = por %p33, %p34
      %p36 = scmp.ne.s32.totalorder %s25, %s28
      %p37 = scmp.eq.s32.totalorder %s20, 1
      %p38 = por %p36, %p37
      %p39 = scmp.ne.s32.totalorder %s28, %s29
      %p40 = scmp.eq.s32.totalorder %s20, 0
      %p41 = por %p39, %p40
      %p42 = scmp.ne.s32.totalorder %s28, %s29
      %p43 = scmp.eq.s32.totalorder %s21, 1
      %p44 = por %p42, %p43
      %p46 = scmp.ne.s32.totalorder %s29, %s45
      %p47 = scmp.eq.s32.totalorder %s21, 0
      %p48 = por %p46, %p47
      %s50 = sadd.s32 %s49, 1
      %p53 = scmp.eq.s32.totalorder %s15, 1
      %p54 = scmp.ne.s32.totalorder %s49, %s51
      %p55 = scmp.eq.s32.totalorder %s15, 0
      %p56 = por %p54, %p55
      %p57 = scmp.ne.s32.totalorder %s49, %s51
      %p58 = scmp.eq.s32.totalorder %s20, 1
      %p59 = por %p57, %p58
      %p60 = scmp.ne.s32.totalorder %s51, %s52
      %p61 = scmp.eq.s32.totalorder %s20, 0
      %p62 = por %p60, %p61
      %p63 = scmp.ne.s32.totalorder %s51, %s52
      %p64 = scmp.eq.s32.totalorder %s21, 1
      %p65 = por %p63, %p64
      %p67 = scmp.ne.s32.totalorder %s52, %s66
      %p68 = scmp.eq.s32.totalorder %s21, 0
      %p69 = por %p67, %p68
      %s70 = ssub.s32 %s15, %s22
      %p71 = scmp.eq.s32.totalorder %s70, 0
      %s73 = sadd.s32 %s72, 1
      %s74 = scalar_select %p71, %s72, %s73
      %p77 = pneg %p71
      %p78 = scmp.eq.s32.totalorder %s15, 1
      %p79 = por %p77, %p78
      %p80 = scmp.ne.s32.totalorder %s72, %s75
      %p81 = scmp.eq.s32.totalorder %s15, 0
      %p82 = por %p80, %p81
      %p83 = scmp.ne.s32.totalorder %s72, %s75
      %p84 = scmp.eq.s32.totalorder %s20, 1
      %p85 = por %p83, %p84
      %p86 = scmp.ne.s32.totalorder %s75, %s76
      %p87 = scmp.eq.s32.totalorder %s20, 0
      %p88 = por %p86, %p87
      %p89 = scmp.ne.s32.totalorder %s75, %s76
      %p90 = scmp.eq.s32.totalorder %s21, 1
      %p91 = por %p89, %p90
      %p93 = scmp.ne.s32.totalorder %s76, %s92
      %p94 = scmp.eq.s32.totalorder %s21, 0
      %p95 = por %p93, %p94
      %p96 = scmp.le.s32.totalorder 1, %s15
      %p97 = scmp.lt.s32.totalorder %s15, 3
      %p98 = pnand %p96, %p97
      %p99 = pneg %p98
      // Predicated region
      $region9: #{tpu_custom_call.1} parent=5 // pred_check
        _
      $region10: #{tpu_custom_call.1} parent=5 // pred_check_branch
        %101 = sbr.rel (%p98) target = $region12
      $region11: #{tpu_custom_call.1} parent=5 // pred_region
        %s102 = ssub.s32 %s15, 1
        // Predicated region
        $region13: #{tpu_custom_call.1} parent=11 // pred_check
          %p103 = pneg %p62
        $region14: #{tpu_custom_call.1} parent=11 // pred_check_branch
          %105 = sbr.rel (%p103) target = $region16
        $region15: #{tpu_custom_call.1} parent=11 // pred_region
          %s107 = ssub.s32 32768, 32768
          %108 = vsyncadd [#allocation6], %s107
          %s109 = sshll.u32 [#allocation5], 4
          %s110 = int_to_ptr.vmem [resolvable:$true] %s109
          %115 = dma.hbm_to_vmem [thread:$0]  %s1, 32768, %s110, [#allocation6], 2048, 2048, 128
        $region16: #{tpu_custom_call.1} parent=11 // pred_fallthru
          _
      $region12: #{tpu_custom_call.1} parent=5 // pred_fallthru
        _
      %p116 = scmp.lt.s32.totalorder %s15, 2
      // Predicated region
      $region17: #{tpu_custom_call.1} parent=5 // pred_check
        %p117 = pneg %p116
      $region18: #{tpu_custom_call.1} parent=5 // pred_check_branch
        %119 = sbr.rel (%p117) target = $region20
      $region19: #{tpu_custom_call.1} parent=5 // pred_region
        // Predicated region
        $region21: #{tpu_custom_call.1} parent=19 // pred_check
          %p120 = pneg %p35
        $region22: #{tpu_custom_call.1} parent=19 // pred_check_branch
          %122 = sbr.rel (%p120) target = $region24
        $region23: #{tpu_custom_call.1} parent=19 // pred_region
          %s123 = sand.u32 %s25, 1
          %s124 = scalar_lea.sflag [#allocation3], %s123
          %s125 = sand.u32 %s25, 1
          %s126 = smul.addr %s125, 8
          %s127 = scalar_lea.vmem [#allocation2], %s126
          %s129 = ssub.s32 128, 128
          %130 = vsyncadd %s124, %s129
          %s131 = smul.addr %s15, 128
          %s132 = scalar_lea.hbm %s0, %s131
          %s134 = sshll.u32 %s127, 4
          %s135 = int_to_ptr.vmem [resolvable:$true] %s134
          %137 = dma.hbm_to_vmem [thread:$0]  %s132, 128, %s135, %s124
        $region24: #{tpu_custom_call.1} parent=19 // pred_fallthru
          _
      $region20: #{tpu_custom_call.1} parent=5 // pred_fallthru
        _
      %p138 = scmp.le.s32.totalorder 1, %s15
      %p139 = scmp.lt.s32.totalorder %s15, 3
      %p140 = pnand %p138, %p139
      %p141 = pneg %p140
      // Predicated region
      $region25: #{tpu_custom_call.1} parent=5 // pred_check
        _
      $region26: #{tpu_custom_call.1} parent=5 // pred_check_branch
        %143 = sbr.rel (%p140) target = $region28
      $region27: #{tpu_custom_call.1} parent=5 // pred_region
        %s144 = ssub.s32 %s15, 1
        %s145 = sand.u32 %s28, 1
        %s146 = scalar_lea.sflag [#allocation3], %s145
        %s147 = sand.u32 %s28, 1
        %s148 = smul.addr %s147, 8
        %s149 = scalar_lea.vmem [#allocation2], %s148
        // Predicated region
        $region29: #{tpu_custom_call.1} parent=27 // pred_check
          %p150 = pneg %p41
        $region30: #{tpu_custom_call.1} parent=27 // pred_check_branch
          %152 = sbr.rel (%p150) target = $region32
        $region31: #{tpu_custom_call.1} parent=27 // pred_region
          %153 = dma.done %s146, 128
        $region32: #{tpu_custom_call.1} parent=27 // pred_fallthru
          _
        // Predicated region
        $region33: #{tpu_custom_call.1} parent=27 // pred_check
          %p154 = pneg %p62
        $region34: #{tpu_custom_call.1} parent=27 // pred_check_branch
          %156 = sbr.rel (%p154) target = $region36
        $region35: #{tpu_custom_call.1} parent=27 // pred_region
          %157 = dma.done [#allocation6], 32768
        $region36: #{tpu_custom_call.1} parent=27 // pred_fallthru
          _
        %s158 = sand.u32 %s28, 1
        %s159 = scalar_lea.sflag [#allocation3], %s158
        %s160 = sand.u32 %s28, 1
        %s161 = smul.addr %s160, 8
        %s162 = scalar_lea.vmem [#allocation2], %s161
        %p163 = pneg %p41
        %p164 = pneg %p38
        %p165 = pneg %p62
        %p166 = pneg %p59
        %p167 = pneg %p88
        %p168 = pneg %p85
        %s169 = sand.u32 %s75, 1
        %s170 = scalar_lea.sflag [#allocation4], %s169
        %s171 = sand.u32 %s75, 1
        %s172 = smul.addr %s171, 128
        %s173 = scalar_lea.vmem [#allocation7], %s172
        %v174 = vld [vmem:[%s149] sm:$0xff]
        %v175 = vmul.f32 %v174, 16.0
        %v176 = vmul.f32 %v175, 0.999
        %v177 = vcvt.f32.s32.to.zero.pseudo %v176
        %v178 = vcvt.s32.f32 %v177
        %v179 = vld [vmem:[#allocation5] sm:$0xff]
        %v180 = vld [vmem:[#allocation5 + $0x8] sm:$0xff]
        %v181 = vld [vmem:[#allocation5 + $0x10] sm:$0xff]
        %v182 = vld [vmem:[#allocation5 + $0x18] sm:$0xff]
        %v183 = vld [vmem:[#allocation5 + $0x20] sm:$0xff]
        %v184 = vld [vmem:[#allocation5 + $0x28] sm:$0xff]
        %v185 = vld [vmem:[#allocation5 + $0x30] sm:$0xff]
        %v186 = vld [vmem:[#allocation5 + $0x38] sm:$0xff]
        %v187 = vld [vmem:[#allocation5 + $0x40] sm:$0xff]
        %v188 = vld [vmem:[#allocation5 + $0x48] sm:$0xff]
        %v189 = vld [vmem:[#allocation5 + $0x50] sm:$0xff]
        %v190 = vld [vmem:[#allocation5 + $0x58] sm:$0xff]
        %v191 = vld [vmem:[#allocation5 + $0x60] sm:$0xff]
        %v192 = vld [vmem:[#allocation5 + $0x68] sm:$0xff]
        %v193 = vld [vmem:[#allocation5 + $0x70] sm:$0xff]
        %v194 = vld [vmem:[#allocation5 + $0x78] sm:$0xff]
        %v195 = vld [vmem:[#allocation5 + $0x80] sm:$0xff]
        %v196 = vld [vmem:[#allocation5 + $0x88] sm:$0xff]
        %v197 = vld [vmem:[#allocation5 + $0x90] sm:$0xff]
        %v198 = vld [vmem:[#allocation5 + $0x98] sm:$0xff]
        %v199 = vld [vmem:[#allocation5 + $0xa0] sm:$0xff]
        %v200 = vld [vmem:[#allocation5 + $0xa8] sm:$0xff]
        %v201 = vld [vmem:[#allocation5 + $0xb0] sm:$0xff]
        %v202 = vld [vmem:[#allocation5 + $0xb8] sm:$0xff]
        %v203 = vld [vmem:[#allocation5 + $0xc0] sm:$0xff]
        %v204 = vld [vmem:[#allocation5 + $0xc8] sm:$0xff]
        %v205 = vld [vmem:[#allocation5 + $0xd0] sm:$0xff]
        %v206 = vld [vmem:[#allocation5 + $0xd8] sm:$0xff]
        %v207 = vld [vmem:[#allocation5 + $0xe0] sm:$0xff]
        %v208 = vld [vmem:[#allocation5 + $0xe8] sm:$0xff]
        %v209 = vld [vmem:[#allocation5 + $0xf0] sm:$0xff]
        %v210 = vld [vmem:[#allocation5 + $0xf8] sm:$0xff]
        %v211 = vld [vmem:[#allocation5 + $0x100] sm:$0xff]
        %v212 = vld [vmem:[#allocation5 + $0x108] sm:$0xff]
        %v213 = vld [vmem:[#allocation5 + $0x110] sm:$0xff]
        %v214 = vld [vmem:[#allocation5 + $0x118] sm:$0xff]
        %v215 = vld [vmem:[#allocation5 + $0x120] sm:$0xff]
        %v216 = vld [vmem:[#allocation5 + $0x128] sm:$0xff]
        %v217 = vld [vmem:[#allocation5 + $0x130] sm:$0xff]
        %v218 = vld [vmem:[#allocation5 + $0x138] sm:$0xff]
        %v219 = vld [vmem:[#allocation5 + $0x140] sm:$0xff]
        %v220 = vld [vmem:[#allocation5 + $0x148] sm:$0xff]
        %v221 = vld [vmem:[#allocation5 + $0x150] sm:$0xff]
        %v222 = vld [vmem:[#allocation5 + $0x158] sm:$0xff]
        %v223 = vld [vmem:[#allocation5 + $0x160] sm:$0xff]
        %v224 = vld [vmem:[#allocation5 + $0x168] sm:$0xff]
        %v225 = vld [vmem:[#allocation5 + $0x170] sm:$0xff]
        %v226 = vld [vmem:[#allocation5 + $0x178] sm:$0xff]
        %v227 = vld [vmem:[#allocation5 + $0x180] sm:$0xff]
        %v228 = vld [vmem:[#allocation5 + $0x188] sm:$0xff]
        %v229 = vld [vmem:[#allocation5 + $0x190] sm:$0xff]
        %v230 = vld [vmem:[#allocation5 + $0x198] sm:$0xff]
        %v231 = vld [vmem:[#allocation5 + $0x1a0] sm:$0xff]
        %v232 = vld [vmem:[#allocation5 + $0x1a8] sm:$0xff]
        %v233 = vld [vmem:[#allocation5 + $0x1b0] sm:$0xff]
        %v234 = vld [vmem:[#allocation5 + $0x1b8] sm:$0xff]
        %v235 = vld [vmem:[#allocation5 + $0x1c0] sm:$0xff]
        %v236 = vld [vmem:[#allocation5 + $0x1c8] sm:$0xff]
        %v237 = vld [vmem:[#allocation5 + $0x1d0] sm:$0xff]
        %v238 = vld [vmem:[#allocation5 + $0x1d8] sm:$0xff]
        %v239 = vld [vmem:[#allocation5 + $0x1e0] sm:$0xff]
        %v240 = vld [vmem:[#allocation5 + $0x1e8] sm:$0xff]
        %v241 = vld [vmem:[#allocation5 + $0x1f0] sm:$0xff]
        %v242 = vld [vmem:[#allocation5 + $0x1f8] sm:$0xff]
        %v243 = vld [vmem:[#allocation5 + $0x200] sm:$0xff]
        %v244 = vld [vmem:[#allocation5 + $0x208] sm:$0xff]
        %v245 = vld [vmem:[#allocation5 + $0x210] sm:$0xff]
        %v246 = vld [vmem:[#allocation5 + $0x218] sm:$0xff]
        %v247 = vld [vmem:[#allocation5 + $0x220] sm:$0xff]
        %v248 = vld [vmem:[#allocation5 + $0x228] sm:$0xff]
        %v249 = vld [vmem:[#allocation5 + $0x230] sm:$0xff]
        %v250 = vld [vmem:[#allocation5 + $0x238] sm:$0xff]
        %v251 = vld [vmem:[#allocation5 + $0x240] sm:$0xff]
        %v252 = vld [vmem:[#allocation5 + $0x248] sm:$0xff]
        %v253 = vld [vmem:[#allocation5 + $0x250] sm:$0xff]
        %v254 = vld [vmem:[#allocation5 + $0x258] sm:$0xff]
        %v255 = vld [vmem:[#allocation5 + $0x260] sm:$0xff]
        %v256 = vld [vmem:[#allocation5 + $0x268] sm:$0xff]
        %v257 = vld [vmem:[#allocation5 + $0x270] sm:$0xff]
        %v258 = vld [vmem:[#allocation5 + $0x278] sm:$0xff]
        %v259 = vld [vmem:[#allocation5 + $0x280] sm:$0xff]
        %v260 = vld [vmem:[#allocation5 + $0x288] sm:$0xff]
        %v261 = vld [vmem:[#allocation5 + $0x290] sm:$0xff]
        %v262 = vld [vmem:[#allocation5 + $0x298] sm:$0xff]
        %v263 = vld [vmem:[#allocation5 + $0x2a0] sm:$0xff]
        %v264 = vld [vmem:[#allocation5 + $0x2a8] sm:$0xff]
        %v265 = vld [vmem:[#allocation5 + $0x2b0] sm:$0xff]
        %v266 = vld [vmem:[#allocation5 + $0x2b8] sm:$0xff]
        %v267 = vld [vmem:[#allocation5 + $0x2c0] sm:$0xff]
        %v268 = vld [vmem:[#allocation5 + $0x2c8] sm:$0xff]
        %v269 = vld [vmem:[#allocation5 + $0x2d0] sm:$0xff]
        %v270 = vld [vmem:[#allocation5 + $0x2d8] sm:$0xff]
        %v271 = vld [vmem:[#allocation5 + $0x2e0] sm:$0xff]
        %v272 = vld [vmem:[#allocation5 + $0x2e8] sm:$0xff]
        %v273 = vld [vmem:[#allocation5 + $0x2f0] sm:$0xff]
        %v274 = vld [vmem:[#allocation5 + $0x2f8] sm:$0xff]
        %v275 = vld [vmem:[#allocation5 + $0x300] sm:$0xff]
        %v276 = vld [vmem:[#allocation5 + $0x308] sm:$0xff]
        %v277 = vld [vmem:[#allocation5 + $0x310] sm:$0xff]
        %v278 = vld [vmem:[#allocation5 + $0x318] sm:$0xff]
        %v279 = vld [vmem:[#allocation5 + $0x320] sm:$0xff]
        %v280 = vld [vmem:[#allocation5 + $0x328] sm:$0xff]
        %v281 = vld [vmem:[#allocation5 + $0x330] sm:$0xff]
        %v282 = vld [vmem:[#allocation5 + $0x338] sm:$0xff]
        %v283 = vld [vmem:[#allocation5 + $0x340] sm:$0xff]
        %v284 = vld [vmem:[#allocation5 + $0x348] sm:$0xff]
        %v285 = vld [vmem:[#allocation5 + $0x350] sm:$0xff]
        %v286 = vld [vmem:[#allocation5 + $0x358] sm:$0xff]
        %v287 = vld [vmem:[#allocation5 + $0x360] sm:$0xff]
        %v288 = vld [vmem:[#allocation5 + $0x368] sm:$0xff]
        %v289 = vld [vmem:[#allocation5 + $0x370] sm:$0xff]
        %v290 = vld [vmem:[#allocation5 + $0x378] sm:$0xff]
        %v291 = vld [vmem:[#allocation5 + $0x380] sm:$0xff]
        %v292 = vld [vmem:[#allocation5 + $0x388] sm:$0xff]
        %v293 = vld [vmem:[#allocation5 + $0x390] sm:$0xff]
        %v294 = vld [vmem:[#allocation5 + $0x398] sm:$0xff]
        %v295 = vld [vmem:[#allocation5 + $0x3a0] sm:$0xff]
        %v296 = vld [vmem:[#allocation5 + $0x3a8] sm:$0xff]
        %v297 = vld [vmem:[#allocation5 + $0x3b0] sm:$0xff]
        %v298 = vld [vmem:[#allocation5 + $0x3b8] sm:$0xff]
        %v299 = vld [vmem:[#allocation5 + $0x3c0] sm:$0xff]
        %v300 = vld [vmem:[#allocation5 + $0x3c8] sm:$0xff]
        %v301 = vld [vmem:[#allocation5 + $0x3d0] sm:$0xff]
        %v302 = vld [vmem:[#allocation5 + $0x3d8] sm:$0xff]
        %v303 = vld [vmem:[#allocation5 + $0x3e0] sm:$0xff]
        %v304 = vld [vmem:[#allocation5 + $0x3e8] sm:$0xff]
        %v305 = vld [vmem:[#allocation5 + $0x3f0] sm:$0xff]
        %v306 = vld [vmem:[#allocation5 + $0x3f8] sm:$0xff]
        %v307 = vld [vmem:[#allocation5 + $0x400] sm:$0xff]
        %v308 = vld [vmem:[#allocation5 + $0x408] sm:$0xff]
        %v309 = vld [vmem:[#allocation5 + $0x410] sm:$0xff]
        %v310 = vld [vmem:[#allocation5 + $0x418] sm:$0xff]
        %v311 = vld [vmem:[#allocation5 + $0x420] sm:$0xff]
        %v312 = vld [vmem:[#allocation5 + $0x428] sm:$0xff]
        %v313 = vld [vmem:[#allocation5 + $0x430] sm:$0xff]
        %v314 = vld [vmem:[#allocation5 + $0x438] sm:$0xff]
        %v315 = vld [vmem:[#allocation5 + $0x440] sm:$0xff]
        %v316 = vld [vmem:[#allocation5 + $0x448] sm:$0xff]
        %v317 = vld [vmem:[#allocation5 + $0x450] sm:$0xff]
        %v318 = vld [vmem:[#allocation5 + $0x458] sm:$0xff]
        %v319 = vld [vmem:[#allocation5 + $0x460] sm:$0xff]
        %v320 = vld [vmem:[#allocation5 + $0x468] sm:$0xff]
        %v321 = vld [vmem:[#allocation5 + $0x470] sm:$0xff]
        %v322 = vld [vmem:[#allocation5 + $0x478] sm:$0xff]
        %v323 = vld [vmem:[#allocation5 + $0x480] sm:$0xff]
        %v324 = vld [vmem:[#allocation5 + $0x488] sm:$0xff]
        %v325 = vld [vmem:[#allocation5 + $0x490] sm:$0xff]
        %v326 = vld [vmem:[#allocation5 + $0x498] sm:$0xff]
        %v327 = vld [vmem:[#allocation5 + $0x4a0] sm:$0xff]
        %v328 = vld [vmem:[#allocation5 + $0x4a8] sm:$0xff]
        %v329 = vld [vmem:[#allocation5 + $0x4b0] sm:$0xff]
        %v330 = vld [vmem:[#allocation5 + $0x4b8] sm:$0xff]
        %v331 = vld [vmem:[#allocation5 + $0x4c0] sm:$0xff]
        %v332 = vld [vmem:[#allocation5 + $0x4c8] sm:$0xff]
        %v333 = vld [vmem:[#allocation5 + $0x4d0] sm:$0xff]
        %v334 = vld [vmem:[#allocation5 + $0x4d8] sm:$0xff]
        %v335 = vld [vmem:[#allocation5 + $0x4e0] sm:$0xff]
        %v336 = vld [vmem:[#allocation5 + $0x4e8] sm:$0xff]
        %v337 = vld [vmem:[#allocation5 + $0x4f0] sm:$0xff]
        %v338 = vld [vmem:[#allocation5 + $0x4f8] sm:$0xff]
        %v339 = vld [vmem:[#allocation5 + $0x500] sm:$0xff]
        %v340 = vld [vmem:[#allocation5 + $0x508] sm:$0xff]
        %v341 = vld [vmem:[#allocation5 + $0x510] sm:$0xff]
        %v342 = vld [vmem:[#allocation5 + $0x518] sm:$0xff]
        %v343 = vld [vmem:[#allocation5 + $0x520] sm:$0xff]
        %v344 = vld [vmem:[#allocation5 + $0x528] sm:$0xff]
        %v345 = vld [vmem:[#allocation5 + $0x530] sm:$0xff]
        %v346 = vld [vmem:[#allocation5 + $0x538] sm:$0xff]
        %v347 = vld [vmem:[#allocation5 + $0x540] sm:$0xff]
        %v348 = vld [vmem:[#allocation5 + $0x548] sm:$0xff]
        %v349 = vld [vmem:[#allocation5 + $0x550] sm:$0xff]
        %v350 = vld [vmem:[#allocation5 + $0x558] sm:$0xff]
        %v351 = vld [vmem:[#allocation5 + $0x560] sm:$0xff]
        %v352 = vld [vmem:[#allocation5 + $0x568] sm:$0xff]
        %v353 = vld [vmem:[#allocation5 + $0x570] sm:$0xff]
        %v354 = vld [vmem:[#allocation5 + $0x578] sm:$0xff]
        %v355 = vld [vmem:[#allocation5 + $0x580] sm:$0xff]
        %v356 = vld [vmem:[#allocation5 + $0x588] sm:$0xff]
        %v357 = vld [vmem:[#allocation5 + $0x590] sm:$0xff]
        %v358 = vld [vmem:[#allocation5 + $0x598] sm:$0xff]
        %v359 = vld [vmem:[#allocation5 + $0x5a0] sm:$0xff]
        %v360 = vld [vmem:[#allocation5 + $0x5a8] sm:$0xff]
        %v361 = vld [vmem:[#allocation5 + $0x5b0] sm:$0xff]
        %v362 = vld [vmem:[#allocation5 + $0x5b8] sm:$0xff]
        %v363 = vld [vmem:[#allocation5 + $0x5c0] sm:$0xff]
        %v364 = vld [vmem:[#allocation5 + $0x5c8] sm:$0xff]
        %v365 = vld [vmem:[#allocation5 + $0x5d0] sm:$0xff]
        %v366 = vld [vmem:[#allocation5 + $0x5d8] sm:$0xff]
        %v367 = vld [vmem:[#allocation5 + $0x5e0] sm:$0xff]
        %v368 = vld [vmem:[#allocation5 + $0x5e8] sm:$0xff]
        %v369 = vld [vmem:[#allocation5 + $0x5f0] sm:$0xff]
        %v370 = vld [vmem:[#allocation5 + $0x5f8] sm:$0xff]
        %v371 = vld [vmem:[#allocation5 + $0x600] sm:$0xff]
        %v372 = vld [vmem:[#allocation5 + $0x608] sm:$0xff]
        %v373 = vld [vmem:[#allocation5 + $0x610] sm:$0xff]
        %v374 = vld [vmem:[#allocation5 + $0x618] sm:$0xff]
        %v375 = vld [vmem:[#allocation5 + $0x620] sm:$0xff]
        %v376 = vld [vmem:[#allocation5 + $0x628] sm:$0xff]
        %v377 = vld [vmem:[#allocation5 + $0x630] sm:$0xff]
        %v378 = vld [vmem:[#allocation5 + $0x638] sm:$0xff]
        %v379 = vld [vmem:[#allocation5 + $0x640] sm:$0xff]
        %v380 = vld [vmem:[#allocation5 + $0x648] sm:$0xff]
        %v381 = vld [vmem:[#allocation5 + $0x650] sm:$0xff]
        %v382 = vld [vmem:[#allocation5 + $0x658] sm:$0xff]
        %v383 = vld [vmem:[#allocation5 + $0x660] sm:$0xff]
        %v384 = vld [vmem:[#allocation5 + $0x668] sm:$0xff]
        %v385 = vld [vmem:[#allocation5 + $0x670] sm:$0xff]
        %v386 = vld [vmem:[#allocation5 + $0x678] sm:$0xff]
        %v387 = vld [vmem:[#allocation5 + $0x680] sm:$0xff]
        %v388 = vld [vmem:[#allocation5 + $0x688] sm:$0xff]
        %v389 = vld [vmem:[#allocation5 + $0x690] sm:$0xff]
        %v390 = vld [vmem:[#allocation5 + $0x698] sm:$0xff]
        %v391 = vld [vmem:[#allocation5 + $0x6a0] sm:$0xff]
        %v392 = vld [vmem:[#allocation5 + $0x6a8] sm:$0xff]
        %v393 = vld [vmem:[#allocation5 + $0x6b0] sm:$0xff]
        %v394 = vld [vmem:[#allocation5 + $0x6b8] sm:$0xff]
        %v395 = vld [vmem:[#allocation5 + $0x6c0] sm:$0xff]
        %v396 = vld [vmem:[#allocation5 + $0x6c8] sm:$0xff]
        %v397 = vld [vmem:[#allocation5 + $0x6d0] sm:$0xff]
        %v398 = vld [vmem:[#allocation5 + $0x6d8] sm:$0xff]
        %v399 = vld [vmem:[#allocation5 + $0x6e0] sm:$0xff]
        %v400 = vld [vmem:[#allocation5 + $0x6e8] sm:$0xff]
        %v401 = vld [vmem:[#allocation5 + $0x6f0] sm:$0xff]
        %v402 = vld [vmem:[#allocation5 + $0x6f8] sm:$0xff]
        %v403 = vld [vmem:[#allocation5 + $0x700] sm:$0xff]
        %v404 = vld [vmem:[#allocation5 + $0x708] sm:$0xff]
        %v405 = vld [vmem:[#allocation5 + $0x710] sm:$0xff]
        %v406 = vld [vmem:[#allocation5 + $0x718] sm:$0xff]
        %v407 = vld [vmem:[#allocation5 + $0x720] sm:$0xff]
        %v408 = vld [vmem:[#allocation5 + $0x728] sm:$0xff]
        %v409 = vld [vmem:[#allocation5 + $0x730] sm:$0xff]
        %v410 = vld [vmem:[#allocation5 + $0x738] sm:$0xff]
        %v411 = vld [vmem:[#allocation5 + $0x740] sm:$0xff]
        %v412 = vld [vmem:[#allocation5 + $0x748] sm:$0xff]
        %v413 = vld [vmem:[#allocation5 + $0x750] sm:$0xff]
        %v414 = vld [vmem:[#allocation5 + $0x758] sm:$0xff]
        %v415 = vld [vmem:[#allocation5 + $0x760] sm:$0xff]
        %v416 = vld [vmem:[#allocation5 + $0x768] sm:$0xff]
        %v417 = vld [vmem:[#allocation5 + $0x770] sm:$0xff]
        %v418 = vld [vmem:[#allocation5 + $0x778] sm:$0xff]
        %v419 = vld [vmem:[#allocation5 + $0x780] sm:$0xff]
        %v420 = vld [vmem:[#allocation5 + $0x788] sm:$0xff]
        %v421 = vld [vmem:[#allocation5 + $0x790] sm:$0xff]
        %v422 = vld [vmem:[#allocation5 + $0x798] sm:$0xff]
        %v423 = vld [vmem:[#allocation5 + $0x7a0] sm:$0xff]
        %v424 = vld [vmem:[#allocation5 + $0x7a8] sm:$0xff]
        %v425 = vld [vmem:[#allocation5 + $0x7b0] sm:$0xff]
        %v426 = vld [vmem:[#allocation5 + $0x7b8] sm:$0xff]
        %v427 = vld [vmem:[#allocation5 + $0x7c0] sm:$0xff]
        %v428 = vld [vmem:[#allocation5 + $0x7c8] sm:$0xff]
        %v429 = vld [vmem:[#allocation5 + $0x7d0] sm:$0xff]
        %v430 = vld [vmem:[#allocation5 + $0x7d8] sm:$0xff]
        %v431 = vld [vmem:[#allocation5 + $0x7e0] sm:$0xff]
        %v432 = vld [vmem:[#allocation5 + $0x7e8] sm:$0xff]
        %v433 = vld [vmem:[#allocation5 + $0x7f0] sm:$0xff]
        %v434 = vld [vmem:[#allocation5 + $0x7f8] sm:$0xff]
        %435 = vmatprep.subr.mxu0 %v180
        %436 = vmatpush1.msra.mxu0 %v179
        %437 = vmatprep.subr.mxu0 %v196
        %438 = vmatpush1.msra.mxu0 %v195
        %439 = vmatprep.subr.mxu0 %v212
        %440 = vmatpush1.msra.mxu0 %v211
        %441 = vmatprep.subr.mxu0 %v228
        %442 = vmatpush1.msra.mxu0 %v227
        %443 = vmatprep.subr.mxu0 %v244
        %444 = vmatpush1.msra.mxu0 %v243
        %445 = vmatprep.subr.mxu0 %v260
        %446 = vmatpush1.msra.mxu0 %v259
        %447 = vmatprep.subr.mxu0 %v276
        %448 = vmatpush1.msra.mxu0 %v275
        %449 = vmatprep.subr.mxu0 %v292
        %450 = vmatpush1.msra.mxu0 %v291
        %451 = vmatprep.subr.mxu0 %v308
        %452 = vmatpush1.msra.mxu0 %v307
        %453 = vmatprep.subr.mxu0 %v324
        %454 = vmatpush1.msra.mxu0 %v323
        %455 = vmatprep.subr.mxu0 %v340
        %456 = vmatpush1.msra.mxu0 %v339
        %457 = vmatprep.subr.mxu0 %v356
        %458 = vmatpush1.msra.mxu0 %v355
        %459 = vmatprep.subr.mxu0 %v372
        %460 = vmatpush1.msra.mxu0 %v371
        %461 = vmatprep.subr.mxu0 %v388
        %462 = vmatpush1.msra.mxu0 %v387
        %463 = vmatprep.subr.mxu0 %v404
        %464 = vmatpush1.msra.mxu0 %v403
        %465 = vmatprep.subr.mxu0 %v420
        %466 = vmatpush1.msra.mxu0 %v419
        %467 = vmatprep.subr.mxu0 0.0
        %468 = vmatpush1.msra.mxu0 0.0
        %469 = vmatprep.subr.mxu0 0.0
        %470 = vmatpush1.msra.mxu0 0.0
        %471 = vmatprep.subr.mxu0 0.0
        %472 = vmatpush1.msra.mxu0 0.0
        %473 = vmatprep.subr.mxu0 0.0
        %474 = vmatpush1.msra.mxu0 0.0
        %475 = vmatprep.subr.mxu0 0.0
        %476 = vmatpush1.msra.mxu0 0.0
        %477 = vmatprep.subr.mxu0 0.0
        %478 = vmatpush1.msra.mxu0 0.0
        %479 = vmatprep.subr.mxu0 0.0
        %480 = vmatpush1.msra.mxu0 0.0
        %481 = vmatprep.subr.mxu0 0.0
        %482 = vmatpush1.msra.mxu0 0.0
        %483 = vmatprep.subr.mxu0 0.0
        %484 = vmatpush1.msra.mxu0 0.0
        %485 = vmatprep.subr.mxu0 0.0
        %486 = vmatpush1.msra.mxu0 0.0
        %487 = vmatprep.subr.mxu0 0.0
        %488 = vmatpush1.msra.mxu0 0.0
        %489 = vmatprep.subr.mxu0 0.0
        %490 = vmatpush1.msra.mxu0 0.0
        %491 = vmatprep.subr.mxu0 0.0
        %492 = vmatpush1.msra.mxu0 0.0
        %493 = vmatprep.subr.mxu0 0.0
        %494 = vmatpush1.msra.mxu0 0.0
        %495 = vmatprep.subr.mxu0 0.0
        %496 = vmatpush1.msra.mxu0 0.0
        %497 = vmatprep.subr.mxu0 0.0
        %498 = vmatpush1.msra.mxu0 0.0
        %499 = vmatprep.mubr.f32.mxu0 0.0
        %500 = vmatmul.mubr.f32.gmra.mrb[0].mxu0 %v178
        %v501 = vpop.f32.mrb[0].mxu0
        %v502 = vadd.f32 0.0, %v501
        %v503 = vpop.f32.mrb[0].mxu0
        %v504 = vadd.f32 0.0, %v503
        %505 = vdwg.mxu0
        %506 = vmatprep.subr.mxu0 %v182
        %507 = vmatpush1.msra.mxu0 %v181
        %508 = vmatprep.subr.mxu0 %v198
        %509 = vmatpush1.msra.mxu0 %v197
        %510 = vmatprep.subr.mxu0 %v214
        %511 = vmatpush1.msra.mxu0 %v213
        %512 = vmatprep.subr.mxu0 %v230
        %513 = vmatpush1.msra.mxu0 %v229
        %514 = vmatprep.subr.mxu0 %v246
        %515 = vmatpush1.msra.mxu0 %v245
        %516 = vmatprep.subr.mxu0 %v262
        %517 = vmatpush1.msra.mxu0 %v261
        %518 = vmatprep.subr.mxu0 %v278
        %519 = vmatpush1.msra.mxu0 %v277
        %520 = vmatprep.subr.mxu0 %v294
        %521 = vmatpush1.msra.mxu0 %v293
        %522 = vmatprep.subr.mxu0 %v310
        %523 = vmatpush1.msra.mxu0 %v309
        %524 = vmatprep.subr.mxu0 %v326
        %525 = vmatpush1.msra.mxu0 %v325
        %526 = vmatprep.subr.mxu0 %v342
        %527 = vmatpush1.msra.mxu0 %v341
        %528 = vmatprep.subr.mxu0 %v358
        %529 = vmatpush1.msra.mxu0 %v357
        %530 = vmatprep.subr.mxu0 %v374
        %531 = vmatpush1.msra.mxu0 %v373
        %532 = vmatprep.subr.mxu0 %v390
        %533 = vmatpush1.msra.mxu0 %v389
        %534 = vmatprep.subr.mxu0 %v406
        %535 = vmatpush1.msra.mxu0 %v405
        %536 = vmatprep.subr.mxu0 %v422
        %537 = vmatpush1.msra.mxu0 %v421
        %538 = vmatprep.subr.mxu0 0.0
        %539 = vmatpush1.msra.mxu0 0.0
        %540 = vmatprep.subr.mxu0 0.0
        %541 = vmatpush1.msra.mxu0 0.0
        %542 = vmatprep.subr.mxu0 0.0
        %543 = vmatpush1.msra.mxu0 0.0
        %544 = vmatprep.subr.mxu0 0.0
        %545 = vmatpush1.msra.mxu0 0.0
        %546 = vmatprep.subr.mxu0 0.0
        %547 = vmatpush1.msra.mxu0 0.0
        %548 = vmatprep.subr.mxu0 0.0
        %549 = vmatpush1.msra.mxu0 0.0
        %550 = vmatprep.subr.mxu0 0.0
        %551 = vmatpush1.msra.mxu0 0.0
        %552 = vmatprep.subr.mxu0 0.0
        %553 = vmatpush1.msra.mxu0 0.0
        %554 = vmatprep.subr.mxu0 0.0
        %555 = vmatpush1.msra.mxu0 0.0
        %556 = vmatprep.subr.mxu0 0.0
        %557 = vmatpush1.msra.mxu0 0.0
        %558 = vmatprep.subr.mxu0 0.0
        %559 = vmatpush1.msra.mxu0 0.0
        %560 = vmatprep.subr.mxu0 0.0
        %561 = vmatpush1.msra.mxu0 0.0
        %562 = vmatprep.subr.mxu0 0.0
        %563 = vmatpush1.msra.mxu0 0.0
        %564 = vmatprep.subr.mxu0 0.0
        %565 = vmatpush1.msra.mxu0 0.0
        %566 = vmatprep.subr.mxu0 0.0
        %567 = vmatpush1.msra.mxu0 0.0
        %568 = vmatprep.subr.mxu0 0.0
        %569 = vmatpush1.msra.mxu0 0.0
        %570 = vmatprep.mubr.f32.mxu0 0.0
        %571 = vmatmul.mubr.f32.gmra.mrb[0].mxu0 %v178
        %v572 = vpop.f32.mrb[0].mxu0
        %v573 = vadd.f32 0.0, %v572
        %v574 = vpop.f32.mrb[0].mxu0
        %v575 = vadd.f32 0.0, %v574
        %576 = vdwg.mxu0
        %577 = vmatprep.subr.mxu0 %v184
        %578 = vmatpush1.msra.mxu0 %v183
        %579 = vmatprep.subr.mxu0 %v200
        %580 = vmatpush1.msra.mxu0 %v199
        %581 = vmatprep.subr.mxu0 %v216
        %582 = vmatpush1.msra.mxu0 %v215
        %583 = vmatprep.subr.mxu0 %v232
        %584 = vmatpush1.msra.mxu0 %v231
        %585 = vmatprep.subr.mxu0 %v248
        %586 = vmatpush1.msra.mxu0 %v247
        %587 = vmatprep.subr.mxu0 %v264
        %588 = vmatpush1.msra.mxu0 %v263
        %589 = vmatprep.subr.mxu0 %v280
        %590 = vmatpush1.msra.mxu0 %v279
        %591 = vmatprep.subr.mxu0 %v296
        %592 = vmatpush1.msra.mxu0 %v295
        %593 = vmatprep.subr.mxu0 %v312
        %594 = vmatpush1.msra.mxu0 %v311
        %595 = vmatprep.subr.mxu0 %v328
        %596 = vmatpush1.msra.mxu0 %v327
        %597 = vmatprep.subr.mxu0 %v344
        %598 = vmatpush1.msra.mxu0 %v343
        %599 = vmatprep.subr.mxu0 %v360
        %600 = vmatpush1.msra.mxu0 %v359
        %601 = vmatprep.subr.mxu0 %v376
        %602 = vmatpush1.msra.mxu0 %v375
        %603 = vmatprep.subr.mxu0 %v392
        %604 = vmatpush1.msra.mxu0 %v391
        %605 = vmatprep.subr.mxu0 %v408
        %606 = vmatpush1.msra.mxu0 %v407
        %607 = vmatprep.subr.mxu0 %v424
        %608 = vmatpush1.msra.mxu0 %v423
        %609 = vmatprep.subr.mxu0 0.0
        %610 = vmatpush1.msra.mxu0 0.0
        %611 = vmatprep.subr.mxu0 0.0
        %612 = vmatpush1.msra.mxu0 0.0
        %613 = vmatprep.subr.mxu0 0.0
        %614 = vmatpush1.msra.mxu0 0.0
        %615 = vmatprep.subr.mxu0 0.0
        %616 = vmatpush1.msra.mxu0 0.0
        %617 = vmatprep.subr.mxu0 0.0
        %618 = vmatpush1.msra.mxu0 0.0
        %619 = vmatprep.subr.mxu0 0.0
        %620 = vmatpush1.msra.mxu0 0.0
        %621 = vmatprep.subr.mxu0 0.0
        %622 = vmatpush1.msra.mxu0 0.0
        %623 = vmatprep.subr.mxu0 0.0
        %624 = vmatpush1.msra.mxu0 0.0
        %625 = vmatprep.subr.mxu0 0.0
        %626 = vmatpush1.msra.mxu0 0.0
        %627 = vmatprep.subr.mxu0 0.0
        %628 = vmatpush1.msra.mxu0 0.0
        %629 = vmatprep.subr.mxu0 0.0
        %630 = vmatpush1.msra.mxu0 0.0
        %631 = vmatprep.subr.mxu0 0.0
        %632 = vmatpush1.msra.mxu0 0.0
        %633 = vmatprep.subr.mxu0 0.0
        %634 = vmatpush1.msra.mxu0 0.0
        %635 = vmatprep.subr.mxu0 0.0
        %636 = vmatpush1.msra.mxu0 0.0
        %637 = vmatprep.subr.mxu0 0.0
        %638 = vmatpush1.msra.mxu0 0.0
        %639 = vmatprep.subr.mxu0 0.0
        %640 = vmatpush1.msra.mxu0 0.0
        %641 = vmatprep.mubr.f32.mxu0 0.0
        %642 = vmatmul.mubr.f32.gmra.mrb[0].mxu0 %v178
        %v643 = vpop.f32.mrb[0].mxu0
        %v644 = vadd.f32 0.0, %v643
        %v645 = vpop.f32.mrb[0].mxu0
        %v646 = vadd.f32 0.0, %v645
        %647 = vdwg.mxu0
        %648 = vmatprep.subr.mxu0 %v186
        %649 = vmatpush1.msra.mxu0 %v185
        %650 = vmatprep.subr.mxu0 %v202
        %651 = vmatpush1.msra.mxu0 %v201
        %652 = vmatprep.subr.mxu0 %v218
        %653 = vmatpush1.msra.mxu0 %v217
        %654 = vmatprep.subr.mxu0 %v234
        %655 = vmatpush1.msra.mxu0 %v233
        %656 = vmatprep.subr.mxu0 %v250
        %657 = vmatpush1.msra.mxu0 %v249
        %658 = vmatprep.subr.mxu0 %v266
        %659 = vmatpush1.msra.mxu0 %v265
        %660 = vmatprep.subr.mxu0 %v282
        %661 = vmatpush1.msra.mxu0 %v281
        %662 = vmatprep.subr.mxu0 %v298
        %663 = vmatpush1.msra.mxu0 %v297
        %664 = vmatprep.subr.mxu0 %v314
        %665 = vmatpush1.msra.mxu0 %v313
        %666 = vmatprep.subr.mxu0 %v330
        %667 = vmatpush1.msra.mxu0 %v329
        %668 = vmatprep.subr.mxu0 %v346
        %669 = vmatpush1.msra.mxu0 %v345
        %670 = vmatprep.subr.mxu0 %v362
        %671 = vmatpush1.msra.mxu0 %v361
        %672 = vmatprep.subr.mxu0 %v378
        %673 = vmatpush1.msra.mxu0 %v377
        %674 = vmatprep.subr.mxu0 %v394
        %675 = vmatpush1.msra.mxu0 %v393
        %676 = vmatprep.subr.mxu0 %v410
        %677 = vmatpush1.msra.mxu0 %v409
        %678 = vmatprep.subr.mxu0 %v426
        %679 = vmatpush1.msra.mxu0 %v425
        %680 = vmatprep.subr.mxu0 0.0
        %681 = vmatpush1.msra.mxu0 0.0
        %682 = vmatprep.subr.mxu0 0.0
        %683 = vmatpush1.msra.mxu0 0.0
        %684 = vmatprep.subr.mxu0 0.0
        %685 = vmatpush1.msra.mxu0 0.0
        %686 = vmatprep.subr.mxu0 0.0
        %687 = vmatpush1.msra.mxu0 0.0
        %688 = vmatprep.subr.mxu0 0.0
        %689 = vmatpush1.msra.mxu0 0.0
        %690 = vmatprep.subr.mxu0 0.0
        %691 = vmatpush1.msra.mxu0 0.0
        %692 = vmatprep.subr.mxu0 0.0
        %693 = vmatpush1.msra.mxu0 0.0
        %694 = vmatprep.subr.mxu0 0.0
        %695 = vmatpush1.msra.mxu0 0.0
        %696 = vmatprep.subr.mxu0 0.0
        %697 = vmatpush1.msra.mxu0 0.0
        %698 = vmatprep.subr.mxu0 0.0
        %699 = vmatpush1.msra.mxu0 0.0
        %700 = vmatprep.subr.mxu0 0.0
        %701 = vmatpush1.msra.mxu0 0.0
        %702 = vmatprep.subr.mxu0 0.0
        %703 = vmatpush1.msra.mxu0 0.0
        %704 = vmatprep.subr.mxu0 0.0
        %705 = vmatpush1.msra.mxu0 0.0
        %706 = vmatprep.subr.mxu0 0.0
        %707 = vmatpush1.msra.mxu0 0.0
        %708 = vmatprep.subr.mxu0 0.0
        %709 = vmatpush1.msra.mxu0 0.0
        %710 = vmatprep.subr.mxu0 0.0
        %711 = vmatpush1.msra.mxu0 0.0
        %712 = vmatprep.mubr.f32.mxu0 0.0
        %713 = vmatmul.mubr.f32.gmra.mrb[0].mxu0 %v178
        %v714 = vpop.f32.mrb[0].mxu0
        %v715 = vadd.f32 0.0, %v714
        %v716 = vpop.f32.mrb[0].mxu0
        %v717 = vadd.f32 0.0, %v716
        %718 = vdwg.mxu0
        %719 = vmatprep.subr.mxu0 %v188
        %720 = vmatpush1.msra.mxu0 %v187
        %721 = vmatprep.subr.mxu0 %v204
        %722 = vmatpush1.msra.mxu0 %v203
        %723 = vmatprep.subr.mxu0 %v220
        %724 = vmatpush1.msra.mxu0 %v219
        %725 = vmatprep.subr.mxu0 %v236
        %726 = vmatpush1.msra.mxu0 %v235
        %727 = vmatprep.subr.mxu0 %v252
        %728 = vmatpush1.msra.mxu0 %v251
        %729 = vmatprep.subr.mxu0 %v268
        %730 = vmatpush1.msra.mxu0 %v267
        %731 = vmatprep.subr.mxu0 %v284
        %732 = vmatpush1.msra.mxu0 %v283
        %733 = vmatprep.subr.mxu0 %v300
        %734 = vmatpush1.msra.mxu0 %v299
        %735 = vmatprep.subr.mxu0 %v316
        %736 = vmatpush1.msra.mxu0 %v315
        %737 = vmatprep.subr.mxu0 %v332
        %738 = vmatpush1.msra.mxu0 %v331
        %739 = vmatprep.subr.mxu0 %v348
        %740 = vmatpush1.msra.mxu0 %v347
        %741 = vmatprep.subr.mxu0 %v364
        %742 = vmatpush1.msra.mxu0 %v363
        %743 = vmatprep.subr.mxu0 %v380
        %744 = vmatpush1.msra.mxu0 %v379
        %745 = vmatprep.subr.mxu0 %v396
        %746 = vmatpush1.msra.mxu0 %v395
        %747 = vmatprep.subr.mxu0 %v412
        %748 = vmatpush1.msra.mxu0 %v411
        %749 = vmatprep.subr.mxu0 %v428
        %750 = vmatpush1.msra.mxu0 %v427
        %751 = vmatprep.subr.mxu0 0.0
        %752 = vmatpush1.msra.mxu0 0.0
        %753 = vmatprep.subr.mxu0 0.0
        %754 = vmatpush1.msra.mxu0 0.0
        %755 = vmatprep.subr.mxu0 0.0
        %756 = vmatpush1.msra.mxu0 0.0
        %757 = vmatprep.subr.mxu0 0.0
        %758 = vmatpush1.msra.mxu0 0.0
        %759 = vmatprep.subr.mxu0 0.0
        %760 = vmatpush1.msra.mxu0 0.0
        %761 = vmatprep.subr.mxu0 0.0
        %762 = vmatpush1.msra.mxu0 0.0
        %763 = vmatprep.subr.mxu0 0.0
        %764 = vmatpush1.msra.mxu0 0.0
        %765 = vmatprep.subr.mxu0 0.0
        %766 = vmatpush1.msra.mxu0 0.0
        %767 = vmatprep.subr.mxu0 0.0
        %768 = vmatpush1.msra.mxu0 0.0
        %769 = vmatprep.subr.mxu0 0.0
        %770 = vmatpush1.msra.mxu0 0.0
        %771 = vmatprep.subr.mxu0 0.0
        %772 = vmatpush1.msra.mxu0 0.0
        %773 = vmatprep.subr.mxu0 0.0
        %774 = vmatpush1.msra.mxu0 0.0
        %775 = vmatprep.subr.mxu0 0.0
        %776 = vmatpush1.msra.mxu0 0.0
        %777 = vmatprep.subr.mxu0 0.0
        %778 = vmatpush1.msra.mxu0 0.0
        %779 = vmatprep.subr.mxu0 0.0
        %780 = vmatpush1.msra.mxu0 0.0
        %781 = vmatprep.subr.mxu0 0.0
        %782 = vmatpush1.msra.mxu0 0.0
        %783 = vmatprep.mubr.f32.mxu0 0.0
        %784 = vmatmul.mubr.f32.gmra.mrb[0].mxu0 %v178
        %v785 = vpop.f32.mrb[0].mxu0
        %v786 = vadd.f32 0.0, %v785
        %v787 = vpop.f32.mrb[0].mxu0
        %v788 = vadd.f32 0.0, %v787
        %789 = vdwg.mxu0
        %790 = vmatprep.subr.mxu0 %v190
        %791 = vmatpush1.msra.mxu0 %v189
        %792 = vmatprep.subr.mxu0 %v206
        %793 = vmatpush1.msra.mxu0 %v205
        %794 = vmatprep.subr.mxu0 %v222
        %795 = vmatpush1.msra.mxu0 %v221
        %796 = vmatprep.subr.mxu0 %v238
        %797 = vmatpush1.msra.mxu0 %v237
        %798 = vmatprep.subr.mxu0 %v254
        %799 = vmatpush1.msra.mxu0 %v253
        %800 = vmatprep.subr.mxu0 %v270
        %801 = vmatpush1.msra.mxu0 %v269
        %802 = vmatprep.subr.mxu0 %v286
        %803 = vmatpush1.msra.mxu0 %v285
        %804 = vmatprep.subr.mxu0 %v302
        %805 = vmatpush1.msra.mxu0 %v301
        %806 = vmatprep.subr.mxu0 %v318
        %807 = vmatpush1.msra.mxu0 %v317
        %808 = vmatprep.subr.mxu0 %v334
        %809 = vmatpush1.msra.mxu0 %v333
        %810 = vmatprep.subr.mxu0 %v350
        %811 = vmatpush1.msra.mxu0 %v349
        %812 = vmatprep.subr.mxu0 %v366
        %813 = vmatpush1.msra.mxu0 %v365
        %814 = vmatprep.subr.mxu0 %v382
        %815 = vmatpush1.msra.mxu0 %v381
        %816 = vmatprep.subr.mxu0 %v398
        %817 = vmatpush1.msra.mxu0 %v397
        %818 = vmatprep.subr.mxu0 %v414
        %819 = vmatpush1.msra.mxu0 %v413
        %820 = vmatprep.subr.mxu0 %v430
        %821 = vmatpush1.msra.mxu0 %v429
        %822 = vmatprep.subr.mxu0 0.0
        %823 = vmatpush1.msra.mxu0 0.0
        %824 = vmatprep.subr.mxu0 0.0
        %825 = vmatpush1.msra.mxu0 0.0
        %826 = vmatprep.subr.mxu0 0.0
        %827 = vmatpush1.msra.mxu0 0.0
        %828 = vmatprep.subr.mxu0 0.0
        %829 = vmatpush1.msra.mxu0 0.0
        %830 = vmatprep.subr.mxu0 0.0
        %831 = vmatpush1.msra.mxu0 0.0
        %832 = vmatprep.subr.mxu0 0.0
        %833 = vmatpush1.msra.mxu0 0.0
        %834 = vmatprep.subr.mxu0 0.0
        %835 = vmatpush1.msra.mxu0 0.0
        %836 = vmatprep.subr.mxu0 0.0
        %837 = vmatpush1.msra.mxu0 0.0
        %838 = vmatprep.subr.mxu0 0.0
        %839 = vmatpush1.msra.mxu0 0.0
        %840 = vmatprep.subr.mxu0 0.0
        %841 = vmatpush1.msra.mxu0 0.0
        %842 = vmatprep.subr.mxu0 0.0
        %843 = vmatpush1.msra.mxu0 0.0
        %844 = vmatprep.subr.mxu0 0.0
        %845 = vmatpush1.msra.mxu0 0.0
        %846 = vmatprep.subr.mxu0 0.0
        %847 = vmatpush1.msra.mxu0 0.0
        %848 = vmatprep.subr.mxu0 0.0
        %849 = vmatpush1.msra.mxu0 0.0
        %850 = vmatprep.subr.mxu0 0.0
        %851 = vmatpush1.msra.mxu0 0.0
        %852 = vmatprep.subr.mxu0 0.0
        %853 = vmatpush1.msra.mxu0 0.0
        %854 = vmatprep.mubr.f32.mxu0 0.0
        %855 = vmatmul.mubr.f32.gmra.mrb[0].mxu0 %v178
        %v856 = vpop.f32.mrb[0].mxu0
        %v857 = vadd.f32 0.0, %v856
        %v858 = vpop.f32.mrb[0].mxu0
        %v859 = vadd.f32 0.0, %v858
        %860 = vdwg.mxu0
        %861 = vmatprep.subr.mxu0 %v192
        %862 = vmatpush1.msra.mxu0 %v191
        %863 = vmatprep.subr.mxu0 %v208
        %864 = vmatpush1.msra.mxu0 %v207
        %865 = vmatprep.subr.mxu0 %v224
        %866 = vmatpush1.msra.mxu0 %v223
        %867 = vmatprep.subr.mxu0 %v240
        %868 = vmatpush1.msra.mxu0 %v239
        %869 = vmatprep.subr.mxu0 %v256
        %870 = vmatpush1.msra.mxu0 %v255
        %871 = vmatprep.subr.mxu0 %v272
        %872 = vmatpush1.msra.mxu0 %v271
        %873 = vmatprep.subr.mxu0 %v288
        %874 = vmatpush1.msra.mxu0 %v287
        %875 = vmatprep.subr.mxu0 %v304
        %876 = vmatpush1.msra.mxu0 %v303
        %877 = vmatprep.subr.mxu0 %v320
        %878 = vmatpush1.msra.mxu0 %v319
        %879 = vmatprep.subr.mxu0 %v336
        %880 = vmatpush1.msra.mxu0 %v335
        %881 = vmatprep.subr.mxu0 %v352
        %882 = vmatpush1.msra.mxu0 %v351
        %883 = vmatprep.subr.mxu0 %v368
        %884 = vmatpush1.msra.mxu0 %v367
        %885 = vmatprep.subr.mxu0 %v384
        %886 = vmatpush1.msra.mxu0 %v383
        %887 = vmatprep.subr.mxu0 %v400
        %888 = vmatpush1.msra.mxu0 %v399
        %889 = vmatprep.subr.mxu0 %v416
        %890 = vmatpush1.msra.mxu0 %v415
        %891 = vmatprep.subr.mxu0 %v432
        %892 = vmatpush1.msra.mxu0 %v431
        %893 = vmatprep.subr.mxu0 0.0
        %894 = vmatpush1.msra.mxu0 0.0
        %895 = vmatprep.subr.mxu0 0.0
        %896 = vmatpush1.msra.mxu0 0.0
        %897 = vmatprep.subr.mxu0 0.0
        %898 = vmatpush1.msra.mxu0 0.0
        %899 = vmatprep.subr.mxu0 0.0
        %900 = vmatpush1.msra.mxu0 0.0
        %901 = vmatprep.subr.mxu0 0.0
        %902 = vmatpush1.msra.mxu0 0.0
        %903 = vmatprep.subr.mxu0 0.0
        %904 = vmatpush1.msra.mxu0 0.0
        %905 = vmatprep.subr.mxu0 0.0
        %906 = vmatpush1.msra.mxu0 0.0
        %907 = vmatprep.subr.mxu0 0.0
        %908 = vmatpush1.msra.mxu0 0.0
        %909 = vmatprep.subr.mxu0 0.0
        %910 = vmatpush1.msra.mxu0 0.0
        %911 = vmatprep.subr.mxu0 0.0
        %912 = vmatpush1.msra.mxu0 0.0
        %913 = vmatprep.subr.mxu0 0.0
        %914 = vmatpush1.msra.mxu0 0.0
        %915 = vmatprep.subr.mxu0 0.0
        %916 = vmatpush1.msra.mxu0 0.0
        %917 = vmatprep.subr.mxu0 0.0
        %918 = vmatpush1.msra.mxu0 0.0
        %919 = vmatprep.subr.mxu0 0.0
        %920 = vmatpush1.msra.mxu0 0.0
        %921 = vmatprep.subr.mxu0 0.0
        %922 = vmatpush1.msra.mxu0 0.0
        %923 = vmatprep.subr.mxu0 0.0
        %924 = vmatpush1.msra.mxu0 0.0
        %925 = vmatprep.mubr.f32.mxu0 0.0
        %926 = vmatmul.mubr.f32.gmra.mrb[0].mxu0 %v178
        %v927 = vpop.f32.mrb[0].mxu0
        %v928 = vadd.f32 0.0, %v927
        %v929 = vpop.f32.mrb[0].mxu0
        %v930 = vadd.f32 0.0, %v929
        %931 = vdwg.mxu0
        %932 = vmatprep.subr.mxu0 %v194
        %933 = vmatpush1.msra.mxu0 %v193
        %934 = vmatprep.subr.mxu0 %v210
        %935 = vmatpush1.msra.mxu0 %v209
        %936 = vmatprep.subr.mxu0 %v226
        %937 = vmatpush1.msra.mxu0 %v225
        %938 = vmatprep.subr.mxu0 %v242
        %939 = vmatpush1.msra.mxu0 %v241
        %940 = vmatprep.subr.mxu0 %v258
        %941 = vmatpush1.msra.mxu0 %v257
        %942 = vmatprep.subr.mxu0 %v274
        %943 = vmatpush1.msra.mxu0 %v273
        %944 = vmatprep.subr.mxu0 %v290
        %945 = vmatpush1.msra.mxu0 %v289
        %946 = vmatprep.subr.mxu0 %v306
        %947 = vmatpush1.msra.mxu0 %v305
        %948 = vmatprep.subr.mxu0 %v322
        %949 = vmatpush1.msra.mxu0 %v321
        %950 = vmatprep.subr.mxu0 %v338
        %951 = vmatpush1.msra.mxu0 %v337
        %952 = vmatprep.subr.mxu0 %v354
        %953 = vmatpush1.msra.mxu0 %v353
        %954 = vmatprep.subr.mxu0 %v370
        %955 = vmatpush1.msra.mxu0 %v369
        %956 = vmatprep.subr.mxu0 %v386
        %957 = vmatpush1.msra.mxu0 %v385
        %958 = vmatprep.subr.mxu0 %v402
        %959 = vmatpush1.msra.mxu0 %v401
        %960 = vmatprep.subr.mxu0 %v418
        %961 = vmatpush1.msra.mxu0 %v417
        %962 = vmatprep.subr.mxu0 %v434
        %963 = vmatpush1.msra.mxu0 %v433
        %964 = vmatprep.subr.mxu0 0.0
        %965 = vmatpush1.msra.mxu0 0.0
        %966 = vmatprep.subr.mxu0 0.0
        %967 = vmatpush1.msra.mxu0 0.0
        %968 = vmatprep.subr.mxu0 0.0
        %969 = vmatpush1.msra.mxu0 0.0
        %970 = vmatprep.subr.mxu0 0.0
        %971 = vmatpush1.msra.mxu0 0.0
        %972 = vmatprep.subr.mxu0 0.0
        %973 = vmatpush1.msra.mxu0 0.0
        %974 = vmatprep.subr.mxu0 0.0
        %975 = vmatpush1.msra.mxu0 0.0
        %976 = vmatprep.subr.mxu0 0.0
        %977 = vmatpush1.msra.mxu0 0.0
        %978 = vmatprep.subr.mxu0 0.0
        %979 = vmatpush1.msra.mxu0 0.0
        %980 = vmatprep.subr.mxu0 0.0
        %981 = vmatpush1.msra.mxu0 0.0
        %982 = vmatprep.subr.mxu0 0.0
        %983 = vmatpush1.msra.mxu0 0.0
        %984 = vmatprep.subr.mxu0 0.0
        %985 = vmatpush1.msra.mxu0 0.0
        %986 = vmatprep.subr.mxu0 0.0
        %987 = vmatpush1.msra.mxu0 0.0
        %988 = vmatprep.subr.mxu0 0.0
        %989 = vmatpush1.msra.mxu0 0.0
        %990 = vmatprep.subr.mxu0 0.0
        %991 = vmatpush1.msra.mxu0 0.0
        %992 = vmatprep.subr.mxu0 0.0
        %993 = vmatpush1.msra.mxu0 0.0
        %994 = vmatprep.subr.mxu0 0.0
        %995 = vmatpush1.msra.mxu0 0.0
        %996 = vmatprep.mubr.f32.mxu0 0.0
        %997 = vmatmul.mubr.f32.gmra.mrb[0].mxu0 %v178
        %v998 = vpop.f32.mrb[0].mxu0
        %v999 = vadd.f32 0.0, %v998
        %v1000 = vpop.f32.mrb[0].mxu0
        %v1001 = vadd.f32 0.0, %v1000
        %1002 = vdwg.mxu0
        %v1003 = vlaneseq
        %v1004 = vand.u32 %v1003, 127
        %v1005 = vadd.s32 %v1004, 128
        %v1006 = vadd.s32 %v1004, 256
        %v1007 = vadd.s32 %v1004, 384
        %v1008 = vadd.s32 %v1004, 512
        %v1009 = vadd.s32 %v1004, 640
        %v1010 = vadd.s32 %v1004, 768
        %v1011 = vadd.s32 %v1004, 896
        %v1012 = vadd.s32 %v1004, 1024
        %v1013 = vadd.s32 %v1004, 1152
        %v1014 = vadd.s32 %v1004, 1280
        %v1015 = vadd.s32 %v1004, 1408
        %v1016 = vadd.s32 %v1004, 1536
        %v1017 = vadd.s32 %v1004, 1664
        %v1018 = vadd.s32 %v1004, 1792
        %v1019 = vadd.s32 %v1004, 1920
        %vm1020 = vcmp.lt.s32.totalorder %v1004, 0
        %v1021 = vsub.s32 0, %v1004
        %v1022 = vsel %vm1020, %v1021, %v1004
        %v1023 = vshrl.u32 %v1022, 4
        %v1024 = vand.u32 %v1022, 15
        %v1025 = vsub.s32 0, %v1024
        %v1026 = vsel %vm1020, %v1025, %v1024
        %vm1027 = vcmp.lt.s32.totalorder %v1005, 0
        %v1028 = vsub.s32 0, %v1005
        %v1029 = vsel %vm1027, %v1028, %v1005
        %v1030 = vshrl.u32 %v1029, 4
        %v1031 = vand.u32 %v1029, 15
        %v1032 = vsub.s32 0, %v1031
        %v1033 = vsel %vm1027, %v1032, %v1031
        %vm1034 = vcmp.lt.s32.totalorder %v1006, 0
        %v1035 = vsub.s32 0, %v1006
        %v1036 = vsel %vm1034, %v1035, %v1006
        %v1037 = vshrl.u32 %v1036, 4
        %v1038 = vand.u32 %v1036, 15
        %v1039 = vsub.s32 0, %v1038
        %v1040 = vsel %vm1034, %v1039, %v1038
        %vm1041 = vcmp.lt.s32.totalorder %v1007, 0
        %v1042 = vsub.s32 0, %v1007
        %v1043 = vsel %vm1041, %v1042, %v1007
        %v1044 = vshrl.u32 %v1043, 4
        %v1045 = vand.u32 %v1043, 15
        %v1046 = vsub.s32 0, %v1045
        %v1047 = vsel %vm1041, %v1046, %v1045
        %vm1048 = vcmp.lt.s32.totalorder %v1008, 0
        %v1049 = vsub.s32 0, %v1008
        %v1050 = vsel %vm1048, %v1049, %v1008
        %v1051 = vshrl.u32 %v1050, 4
        %v1052 = vand.u32 %v1050, 15
        %v1053 = vsub.s32 0, %v1052
        %v1054 = vsel %vm1048, %v1053, %v1052
        %vm1055 = vcmp.lt.s32.totalorder %v1009, 0
        %v1056 = vsub.s32 0, %v1009
        %v1057 = vsel %vm1055, %v1056, %v1009
        %v1058 = vshrl.u32 %v1057, 4
        %v1059 = vand.u32 %v1057, 15
        %v1060 = vsub.s32 0, %v1059
        %v1061 = vsel %vm1055, %v1060, %v1059
        %vm1062 = vcmp.lt.s32.totalorder %v1010, 0
        %v1063 = vsub.s32 0, %v1010
        %v1064 = vsel %vm1062, %v1063, %v1010
        %v1065 = vshrl.u32 %v1064, 4
        %v1066 = vand.u32 %v1064, 15
        %v1067 = vsub.s32 0, %v1066
        %v1068 = vsel %vm1062, %v1067, %v1066
        %vm1069 = vcmp.lt.s32.totalorder %v1011, 0
        %v1070 = vsub.s32 0, %v1011
        %v1071 = vsel %vm1069, %v1070, %v1011
        %v1072 = vshrl.u32 %v1071, 4
        %v1073 = vand.u32 %v1071, 15
        %v1074 = vsub.s32 0, %v1073
        %v1075 = vsel %vm1069, %v1074, %v1073
        %vm1076 = vcmp.lt.s32.totalorder %v1012, 0
        %v1077 = vsub.s32 0, %v1012
        %v1078 = vsel %vm1076, %v1077, %v1012
        %v1079 = vshrl.u32 %v1078, 4
        %v1080 = vand.u32 %v1078, 15
        %v1081 = vsub.s32 0, %v1080
        %v1082 = vsel %vm1076, %v1081, %v1080
        %vm1083 = vcmp.lt.s32.totalorder %v1013, 0
        %v1084 = vsub.s32 0, %v1013
        %v1085 = vsel %vm1083, %v1084, %v1013
        %v1086 = vshrl.u32 %v1085, 4
        %v1087 = vand.u32 %v1085, 15
        %v1088 = vsub.s32 0, %v1087
        %v1089 = vsel %vm1083, %v1088, %v1087
        %vm1090 = vcmp.lt.s32.totalorder %v1014, 0
        %v1091 = vsub.s32 0, %v1014
        %v1092 = vsel %vm1090, %v1091, %v1014
        %v1093 = vshrl.u32 %v1092, 4
        %v1094 = vand.u32 %v1092, 15
        %v1095 = vsub.s32 0, %v1094
        %v1096 = vsel %vm1090, %v1095, %v1094
        %vm1097 = vcmp.lt.s32.totalorder %v1015, 0
        %v1098 = vsub.s32 0, %v1015
        %v1099 = vsel %vm1097, %v1098, %v1015
        %v1100 = vshrl.u32 %v1099, 4
        %v1101 = vand.u32 %v1099, 15
        %v1102 = vsub.s32 0, %v1101
        %v1103 = vsel %vm1097, %v1102, %v1101
        %vm1104 = vcmp.lt.s32.totalorder %v1016, 0
        %v1105 = vsub.s32 0, %v1016
        %v1106 = vsel %vm1104, %v1105, %v1016
        %v1107 = vshrl.u32 %v1106, 4
        %v1108 = vand.u32 %v1106, 15
        %v1109 = vsub.s32 0, %v1108
        %v1110 = vsel %vm1104, %v1109, %v1108
        %vm1111 = vcmp.lt.s32.totalorder %v1017, 0
        %v1112 = vsub.s32 0, %v1017
        %v1113 = vsel %vm1111, %v1112, %v1017
        %v1114 = vshrl.u32 %v1113, 4
        %v1115 = vand.u32 %v1113, 15
        %v1116 = vsub.s32 0, %v1115
        %v1117 = vsel %vm1111, %v1116, %v1115
        %vm1118 = vcmp.lt.s32.totalorder %v1018, 0
        %v1119 = vsub.s32 0, %v1018
        %v1120 = vsel %vm1118, %v1119, %v1018
        %v1121 = vshrl.u32 %v1120, 4
        %v1122 = vand.u32 %v1120, 15
        %v1123 = vsub.s32 0, %v1122
        %v1124 = vsel %vm1118, %v1123, %v1122
        %vm1125 = vcmp.lt.s32.totalorder %v1019, 0
        %v1126 = vsub.s32 0, %v1019
        %v1127 = vsel %vm1125, %v1126, %v1019
        %v1128 = vshrl.u32 %v1127, 4
        %v1129 = vand.u32 %v1127, 15
        %v1130 = vsub.s32 0, %v1129
        %v1131 = vsel %vm1125, %v1130, %v1129
        %vm1132 = vcmp.ne.s32.totalorder %v1026, 0
        %vm1133 = vcmp.ne.s32.totalorder %v1033, 0
        %vm1134 = vcmp.ne.s32.totalorder %v1040, 0
        %vm1135 = vcmp.ne.s32.totalorder %v1047, 0
        %vm1136 = vcmp.ne.s32.totalorder %v1054, 0
        %vm1137 = vcmp.ne.s32.totalorder %v1061, 0
        %vm1138 = vcmp.ne.s32.totalorder %v1068, 0
        %vm1139 = vcmp.ne.s32.totalorder %v1075, 0
        %vm1140 = vcmp.ne.s32.totalorder %v1082, 0
        %vm1141 = vcmp.ne.s32.totalorder %v1089, 0
        %vm1142 = vcmp.ne.s32.totalorder %v1096, 0
        %vm1143 = vcmp.ne.s32.totalorder %v1103, 0
        %vm1144 = vcmp.ne.s32.totalorder %v1110, 0
        %vm1145 = vcmp.ne.s32.totalorder %v1117, 0
        %vm1146 = vcmp.ne.s32.totalorder %v1124, 0
        %vm1147 = vcmp.ne.s32.totalorder %v1131, 0
        %vm1148 = vcmp.lt.s32.totalorder %v1026, 0
        %vm1149 = vcmp.lt.s32.totalorder %v1033, 0
        %vm1150 = vcmp.lt.s32.totalorder %v1040, 0
        %vm1151 = vcmp.lt.s32.totalorder %v1047, 0
        %vm1152 = vcmp.lt.s32.totalorder %v1054, 0
        %vm1153 = vcmp.lt.s32.totalorder %v1061, 0
        %vm1154 = vcmp.lt.s32.totalorder %v1068, 0
        %vm1155 = vcmp.lt.s32.totalorder %v1075, 0
        %vm1156 = vcmp.lt.s32.totalorder %v1082, 0
        %vm1157 = vcmp.lt.s32.totalorder %v1089, 0
        %vm1158 = vcmp.lt.s32.totalorder %v1096, 0
        %vm1159 = vcmp.lt.s32.totalorder %v1103, 0
        %vm1160 = vcmp.lt.s32.totalorder %v1110, 0
        %vm1161 = vcmp.lt.s32.totalorder %v1117, 0
        %vm1162 = vcmp.lt.s32.totalorder %v1124, 0
        %vm1163 = vcmp.lt.s32.totalorder %v1131, 0
        %vm1164 = vmand %vm1148, %vm1132
        %vm1165 = vmand %vm1149, %vm1133
        %vm1166 = vmand %vm1150, %vm1134
        %vm1167 = vmand %vm1151, %vm1135
        %vm1168 = vmand %vm1152, %vm1136
        %vm1169 = vmand %vm1153, %vm1137
        %vm1170 = vmand %vm1154, %vm1138
        %vm1171 = vmand %vm1155, %vm1139
        %vm1172 = vmand %vm1156, %vm1140
        %vm1173 = vmand %vm1157, %vm1141
        %vm1174 = vmand %vm1158, %vm1142
        %vm1175 = vmand %vm1159, %vm1143
        %vm1176 = vmand %vm1160, %vm1144
        %vm1177 = vmand %vm1161, %vm1145
        %vm1178 = vmand %vm1162, %vm1146
        %vm1179 = vmand %vm1163, %vm1147
        %v1180 = vadd.s32 %v1026, 16
        %v1181 = vadd.s32 %v1033, 16
        %v1182 = vadd.s32 %v1040, 16
        %v1183 = vadd.s32 %v1047, 16
        %v1184 = vadd.s32 %v1054, 16
        %v1185 = vadd.s32 %v1061, 16
        %v1186 = vadd.s32 %v1068, 16
        %v1187 = vadd.s32 %v1075, 16
        %v1188 = vadd.s32 %v1082, 16
        %v1189 = vadd.s32 %v1089, 16
        %v1190 = vadd.s32 %v1096, 16
        %v1191 = vadd.s32 %v1103, 16
        %v1192 = vadd.s32 %v1110, 16
        %v1193 = vadd.s32 %v1117, 16
        %v1194 = vadd.s32 %v1124, 16
        %v1195 = vadd.s32 %v1131, 16
        %v1196 = vsel %vm1164, %v1180, %v1026
        %v1197 = vsel %vm1165, %v1181, %v1033
        %v1198 = vsel %vm1166, %v1182, %v1040
        %v1199 = vsel %vm1167, %v1183, %v1047
        %v1200 = vsel %vm1168, %v1184, %v1054
        %v1201 = vsel %vm1169, %v1185, %v1061
        %v1202 = vsel %vm1170, %v1186, %v1068
        %v1203 = vsel %vm1171, %v1187, %v1075
        %v1204 = vsel %vm1172, %v1188, %v1082
        %v1205 = vsel %vm1173, %v1189, %v1089
        %v1206 = vsel %vm1174, %v1190, %v1096
        %v1207 = vsel %vm1175, %v1191, %v1103
        %v1208 = vsel %vm1176, %v1192, %v1110
        %v1209 = vsel %vm1177, %v1193, %v1117
        %v1210 = vsel %vm1178, %v1194, %v1124
        %v1211 = vsel %vm1179, %v1195, %v1131
        %v1212 = vcvt.s32.f32 %v1196
        %v1213 = vcvt.s32.f32 %v1197
        %v1214 = vcvt.s32.f32 %v1198
        %v1215 = vcvt.s32.f32 %v1199
        %v1216 = vcvt.s32.f32 %v1200
        %v1217 = vcvt.s32.f32 %v1201
        %v1218 = vcvt.s32.f32 %v1202
        %v1219 = vcvt.s32.f32 %v1203
        %v1220 = vcvt.s32.f32 %v1204
        %v1221 = vcvt.s32.f32 %v1205
        %v1222 = vcvt.s32.f32 %v1206
        %v1223 = vcvt.s32.f32 %v1207
        %v1224 = vcvt.s32.f32 %v1208
        %v1225 = vcvt.s32.f32 %v1209
        %v1226 = vcvt.s32.f32 %v1210
        %v1227 = vcvt.s32.f32 %v1211
        %v1228 = vsub.f32 %v502, %v1212
        %v1229 = vsub.f32 %v504, %v1213
        %v1230 = vsub.f32 %v573, %v1214
        %v1231 = vsub.f32 %v575, %v1215
        %v1232 = vsub.f32 %v644, %v1216
        %v1233 = vsub.f32 %v646, %v1217
        %v1234 = vsub.f32 %v715, %v1218
        %v1235 = vsub.f32 %v717, %v1219
        %v1236 = vsub.f32 %v786, %v1220
        %v1237 = vsub.f32 %v788, %v1221
        %v1238 = vsub.f32 %v857, %v1222
        %v1239 = vsub.f32 %v859, %v1223
        %v1240 = vsub.f32 %v928, %v1224
        %v1241 = vsub.f32 %v930, %v1225
        %v1242 = vsub.f32 %v999, %v1226
        %v1243 = vsub.f32 %v1001, %v1227
        %v1244 = vand.u32 2147483647, %v1228
        %v1245 = vand.u32 2147483647, %v1229
        %v1246 = vand.u32 2147483647, %v1230
        %v1247 = vand.u32 2147483647, %v1231
        %v1248 = vand.u32 2147483647, %v1232
        %v1249 = vand.u32 2147483647, %v1233
        %v1250 = vand.u32 2147483647, %v1234
        %v1251 = vand.u32 2147483647, %v1235
        %v1252 = vand.u32 2147483647, %v1236
        %v1253 = vand.u32 2147483647, %v1237
        %v1254 = vand.u32 2147483647, %v1238
        %v1255 = vand.u32 2147483647, %v1239
        %v1256 = vand.u32 2147483647, %v1240
        %v1257 = vand.u32 2147483647, %v1241
        %v1258 = vand.u32 2147483647, %v1242
        %v1259 = vand.u32 2147483647, %v1243
        %vm1260 = vcmp.lt.f32.partialorder %v1244, 0.5
        %vm1261 = vcmp.lt.f32.partialorder %v1245, 0.5
        %vm1262 = vcmp.lt.f32.partialorder %v1246, 0.5
        %vm1263 = vcmp.lt.f32.partialorder %v1247, 0.5
        %vm1264 = vcmp.lt.f32.partialorder %v1248, 0.5
        %vm1265 = vcmp.lt.f32.partialorder %v1249, 0.5
        %vm1266 = vcmp.lt.f32.partialorder %v1250, 0.5
        %vm1267 = vcmp.lt.f32.partialorder %v1251, 0.5
        %vm1268 = vcmp.lt.f32.partialorder %v1252, 0.5
        %vm1269 = vcmp.lt.f32.partialorder %v1253, 0.5
        %vm1270 = vcmp.lt.f32.partialorder %v1254, 0.5
        %vm1271 = vcmp.lt.f32.partialorder %v1255, 0.5
        %vm1272 = vcmp.lt.f32.partialorder %v1256, 0.5
        %vm1273 = vcmp.lt.f32.partialorder %v1257, 0.5
        %vm1274 = vcmp.lt.f32.partialorder %v1258, 0.5
        %vm1275 = vcmp.lt.f32.partialorder %v1259, 0.5
        %v1276 = vsel %vm1260, 1, 0
        %v1277 = vsel %vm1261, 1, 0
        %v1278 = vsel %vm1262, 1, 0
        %v1279 = vsel %vm1263, 1, 0
        %v1280 = vsel %vm1264, 1, 0
        %v1281 = vsel %vm1265, 1, 0
        %v1282 = vsel %vm1266, 1, 0
        %v1283 = vsel %vm1267, 1, 0
        %v1284 = vsel %vm1268, 1, 0
        %v1285 = vsel %vm1269, 1, 0
        %v1286 = vsel %vm1270, 1, 0
        %v1287 = vsel %vm1271, 1, 0
        %v1288 = vsel %vm1272, 1, 0
        %v1289 = vsel %vm1273, 1, 0
        %v1290 = vsel %vm1274, 1, 0
        %v1291 = vsel %vm1275, 1, 0
        %v1292 = vcvt.s32.f32 %v1276
        %v1293 = vcvt.s32.f32 %v1277
        %v1294 = vcvt.s32.f32 %v1278
        %v1295 = vcvt.s32.f32 %v1279
        %v1296 = vcvt.s32.f32 %v1280
        %v1297 = vcvt.s32.f32 %v1281
        %v1298 = vcvt.s32.f32 %v1282
        %v1299 = vcvt.s32.f32 %v1283
        %v1300 = vcvt.s32.f32 %v1284
        %v1301 = vcvt.s32.f32 %v1285
        %v1302 = vcvt.s32.f32 %v1286
        %v1303 = vcvt.s32.f32 %v1287
        %v1304 = vcvt.s32.f32 %v1288
        %v1305 = vcvt.s32.f32 %v1289
        %v1306 = vcvt.s32.f32 %v1290
        %v1307 = vcvt.s32.f32 %v1291
        %1308 = vst [vmem:[%s173] sm:$0xff] %v1292
        %1309 = vst [vmem:[%s173 + $0x8] sm:$0xff] %v1293
        %1310 = vst [vmem:[%s173 + $0x10] sm:$0xff] %v1294
        %1311 = vst [vmem:[%s173 + $0x18] sm:$0xff] %v1295
        %1312 = vst [vmem:[%s173 + $0x20] sm:$0xff] %v1296
        %1313 = vst [vmem:[%s173 + $0x28] sm:$0xff] %v1297
        %1314 = vst [vmem:[%s173 + $0x30] sm:$0xff] %v1298
        %1315 = vst [vmem:[%s173 + $0x38] sm:$0xff] %v1299
        %1316 = vst [vmem:[%s173 + $0x40] sm:$0xff] %v1300
        %1317 = vst [vmem:[%s173 + $0x48] sm:$0xff] %v1301
        %1318 = vst [vmem:[%s173 + $0x50] sm:$0xff] %v1302
        %1319 = vst [vmem:[%s173 + $0x58] sm:$0xff] %v1303
        %1320 = vst [vmem:[%s173 + $0x60] sm:$0xff] %v1304
        %1321 = vst [vmem:[%s173 + $0x68] sm:$0xff] %v1305
        %1322 = vst [vmem:[%s173 + $0x70] sm:$0xff] %v1306
        %1323 = vst [vmem:[%s173 + $0x78] sm:$0xff] %v1307
        %s1324 = sand.u32 %s75, 1
        %s1325 = scalar_lea.sflag [#allocation4], %s1324
        %s1326 = sand.u32 %s75, 1
        %s1327 = smul.addr %s1326, 128
        %s1328 = scalar_lea.vmem [#allocation7], %s1327
        // Predicated region
        $region37: #{tpu_custom_call.1} parent=27 // pred_check
          %p1329 = pneg %p85
        $region38: #{tpu_custom_call.1} parent=27 // pred_check_branch
          %1331 = sbr.rel (%p1329) target = $region40
        $region39: #{tpu_custom_call.1} parent=27 // pred_region
          %s1333 = ssub.s32 2048, 2048
          %1334 = vsyncadd %s1325, %s1333
          %s1335 = smul.addr %s20, 16
          %s1336 = smul.addr %s1335, 128
          %s1337 = scalar_lea.hbm %s2, %s1336
          %s1339 = sshll.u32 %s1328, 4
          %s1340 = int_to_ptr.vmem [resolvable:$true] %s1339
          %1342 = dma.vmem_to_hbm [thread:$0]  %s1340, 2048, %s1337, %s1325
        $region40: #{tpu_custom_call.1} parent=27 // pred_fallthru
          _
      $region28: #{tpu_custom_call.1} parent=5 // pred_fallthru
        _
      %p1343 = scmp.le.s32.totalorder 2, %s15
      // Predicated region
      $region41: #{tpu_custom_call.1} parent=5 // pred_check
        %p1344 = pneg %p1343
      $region42: #{tpu_custom_call.1} parent=5 // pred_check_branch
        %1346 = sbr.rel (%p1344) target = $region44
      $region43: #{tpu_custom_call.1} parent=5 // pred_region
        %s1347 = ssub.s32 %s15, 2
        // Predicated region
        $region45: #{tpu_custom_call.1} parent=43 // pred_check
          %p1348 = pneg %p91
        $region46: #{tpu_custom_call.1} parent=43 // pred_check_branch
          %1350 = sbr.rel (%p1348) target = $region48
        $region47: #{tpu_custom_call.1} parent=43 // pred_region
          %s1351 = sand.u32 %s76, 1
          %s1352 = scalar_lea.sflag [#allocation4], %s1351
          %s1353 = sand.u32 %s76, 1
          %s1354 = smul.addr %s1353, 128
          %s1355 = scalar_lea.vmem [#allocation7], %s1354
          %1356 = dma.done %s1352, 2048
        $region48: #{tpu_custom_call.1} parent=43 // pred_fallthru
          _
      $region44: #{tpu_custom_call.1} parent=5 // pred_fallthru
        _
    $region6: #{tpu_custom_call.1} parent=1 // loop_footer
      %s19 = sadd.s32 1, %s15
    $region7: #{tpu_custom_call.1} parent=1 // loop_footer_branch
      %14 = sbr.rel target = $region3
    $region8: #{tpu_custom_call.1} parent=1 // loop_exit
      _
    %1357 = vsyncpa [#allocation3], 1
    %s1358 = scalar_lea.sflag [#allocation3], 1
    %1359 = vsyncpa %s1358, 1
    %1360 = vsyncpa [#allocation6], 1
    %1361 = vsyncpa [#allocation4], 1
    %s1362 = scalar_lea.sflag [#allocation4], 1
    %1363 = vsyncpa %s1362, 1

</llo_original>
